<compile_context>
chip_gen: v7x
topology: tpu7x:2x2x1
jax: 0.10.0
libtpu: 0.0.40
codegen_flags: <defaults>
</compile_context>

<pallas_src>
import functools
import math

import jax
import jax.numpy as jnp
from jax import lax
from jax.experimental import pallas as pl
from jax.experimental.pallas import tpu as pltpu


# ----------------------------- config (static) ------------------------------
SPIKE_THRESHOLD = 1.0
RESET_POTENTIAL = 0.0
MEMBRANE_TAU = 20.0
REFRACTORY_PERIOD = 2.0
TIME_STEP = 1.0
SPARSE_CONNECTIVITY = 0.2

_DECAY = math.exp(-TIME_STEP / MEMBRANE_TAU)

_LANE = 128                       # f32 lane tile
_SUBLANE = 8                      # f32 sublane tile
_TN_CAP = 512                     # cap on OUT tile (lanes)
_TT_CAP = 256                     # cap on timestep tile (sublanes / MXU rows)
_STREAM_BUDGET = 16 * 1024 * 1024 # double-buffered W + X tile budget (bytes)
_VMEM_LIMIT = 32 * 1024 * 1024    # scoped-VMEM limit (safe on v5e/v6e/v7x)


def _round_up(x, m):
    return ((x + m - 1) // m) * m


def _select_mm_tiles(in_size, out_size):
    """Deterministic tile/padding choice for the GEMM.  Depends only on the
    layer dimensions so `prepare_spiking_weights` and the forward agree."""
    # OUT tile (lane-dense last dim of every state / output block)
    out_base = _round_up(out_size, _LANE)
    tn = min(_TN_CAP, out_base)
    # prefer >= 2 OUT tiles when the layer is big enough (v7x: 2 TensorCores)
    if out_base // tn < 2 and out_base >= 2 * _LANE:
        tn = _round_up(out_base // 2, _LANE)
    out_pad = _round_up(out_base, tn)

    # IN (contraction) tile: single K step whenever the double-buffered
    # weight + X tiles fit the streaming budget (assuming a full _TT_CAP tile).
    per_k_row_bytes = 2 * 4 * (tn + _TT_CAP)       # dbl-buffered W row + X col
    tk_cap = max(_LANE, (_STREAM_BUDGET // per_k_row_bytes) // _LANE * _LANE)
    in_base = _round_up(in_size, _SUBLANE)
    if in_base <= tk_cap:
        tk, in_pad = in_base, in_base               # single K step (preferred)
    else:
        tk = tk_cap
        in_pad = _round_up(in_size, tk)
    return tn, out_pad, tk, in_pad


# --------------------------- weight prep (run ONCE) --------------------------
def prepare_spiking_weights(weight, connectivity_mask, dtype=jnp.float32):
    """Fold the (static) connectivity mask into the weight, transpose to
    (IN, OUT) and pad to the kernel's tile grid.  Call ONCE per layer and reuse
    the result across timesteps / forward calls.

    `dtype=jnp.bfloat16` halves weight HBM traffic (accumulation stays f32)."""
    out_size, in_size = weight.shape
    _, out_pad, _, in_pad = _select_mm_tiles(in_size, out_size)
    eff_w = (weight * connectivity_mask).T.astype(dtype)        # (IN, OUT)
    eff_w = jnp.pad(eff_w, ((0, in_pad - in_size), (0, out_pad - out_size)))
    return eff_w


# ------------------------------- Pallas kernel ------------------------------
def _spiking_layer_kernel(
    x_ref,        # (TT, TK)  input spikes tile (timesteps x inputs)
    w_ref,        # (TK, TN)  pre-masked, pre-transposed weight tile
    v_ref,        # (1, TN)   membrane potential (state in)
    r_ref,        # (1, TN)   refractory timer   (state in)
    sc_ref,       # (1, TN)   spike count        (state in)
    spikes_ref,   # (TT, TN)  output spikes (doubles as the current accumulator)
    v_out_ref,    # (1, TN)   new membrane potential (carries running state)
    r_out_ref,    # (1, TN)   new refractory timer
    sc_out_ref,   # (1, TN)   new spike count
    *,
    n_steps, tt, decay, threshold, reset_potential, time_step, refractory_period,
):
    t = pl.program_id(1)
    k = pl.program_id(2)
    nk = pl.num_programs(2)

    # Load the neuron state into the resident state output blocks once per OUT tile.
    @pl.when((t == 0) & (k == 0))
    def _():
        v_out_ref[...] = v_ref[...]
        r_out_ref[...] = r_ref[...]
        sc_out_ref[...] = sc_ref[...]

    # Input-current GEMM partial sums, accumulated directly in the resident
    # spikes output block:  (TT, TK) @ (TK, TN) -> (TT, TN)   on the MXU.
    @pl.when(k == 0)
    def _():
        spikes_ref[...] = jnp.zeros_like(spikes_ref)

    spikes_ref[...] += jnp.dot(
        x_ref[...], w_ref[...], preferred_element_type=jnp.float32
    )

    # Last K step: sequential LIF recurrence over this tile's timesteps (VPU scan).
    @pl.when(k == nk - 1)
    def _():
        n_valid = jnp.minimum(tt, n_steps - t * tt)   # skip zero-padded timesteps

        def step(s, carry):
            current = spikes_ref[pl.ds(s, 1), :]                     # (1, TN)
            v = v_out_ref[...] * decay + current
            r = r_out_ref[...]
            v = jnp.where(r > 0.0, reset_potential, v)               # refractory clamp
            r = jnp.maximum(r - time_step, 0.0)
            spk = (v > threshold).astype(jnp.float32)                # strict >, as in torch
            v_out_ref[...] = jnp.where(spk > 0.0, reset_potential, v)
            r_out_ref[...] = jnp.where(spk > 0.0, refractory_period, r)
            sc_out_ref[...] = sc_out_ref[...] + spk
            spikes_ref[pl.ds(s, 1), :] = spk
            return carry

        lax.fori_loop(0, n_valid, step, 0)


# --------------------------------- wrapper ----------------------------------
@jax.jit
def spiking_layer_forward(
    input_spike_train,     # (T, IN) f32 — T timesteps batched (weight read once)
    eff_w,                 # (IN_pad, OUT_pad) from prepare_spiking_weights
    membrane_potential,    # (OUT,) f32
    refractory_timer,      # (OUT,) f32
    spike_count,           # (OUT,) f32
):
    """Runs T LIF timesteps.  Returns (spikes (T, OUT), v, r, spike_count)."""
    n_steps, in_size = input_spike_train.shape
    out_size = membrane_potential.shape[0]

    tn, out_pad, tk, in_pad = _select_mm_tiles(in_size, out_size)
    assert eff_w.shape == (in_pad, out_pad), (
        "eff_w was not prepared with prepare_spiking_weights for this layer size"
    )

    # timestep tile (sublane axis of X / spikes)
    tt = min(_round_up(n_steps, _SUBLANE), _TT_CAP)
    t_pad = _round_up(n_steps, tt)

    x = jnp.pad(
        input_spike_train.astype(eff_w.dtype),
        ((0, t_pad - n_steps), (0, in_pad - in_size)),
    )

    def _pad_state(s):
        s = jnp.pad(s.astype(jnp.float32), (0, out_pad - out_size))
        return s.reshape(1, out_pad)

    v = _pad_state(membrane_potential)
    r = _pad_state(refractory_timer)
    sc = _pad_state(spike_count)

    kernel = functools.partial(
        _spiking_layer_kernel,
        n_steps=n_steps,
        tt=tt,
        decay=_DECAY,
        threshold=SPIKE_THRESHOLD,
        reset_potential=RESET_POTENTIAL,
        time_step=TIME_STEP,
        refractory_period=REFRACTORY_PERIOD,
    )

    state_spec = pl.BlockSpec((1, tn), lambda i, t, k: (0, i))
    grid = (out_pad // tn, t_pad // tt, in_pad // tk)

    spikes, v_new, r_new, sc_new = pl.pallas_call(
        kernel,
        out_shape=(
            jax.ShapeDtypeStruct((t_pad, out_pad), jnp.float32),   # spikes
            jax.ShapeDtypeStruct((1, out_pad), jnp.float32),       # v
            jax.ShapeDtypeStruct((1, out_pad), jnp.float32),       # r
            jax.ShapeDtypeStruct((1, out_pad), jnp.float32),       # spike_count
        ),
        grid_spec=pltpu.PrefetchScalarGridSpec(
            num_scalar_prefetch=0,
            grid=grid,
            in_specs=[
                pl.BlockSpec((tt, tk), lambda i, t, k: (t, k)),    # X tile
                pl.BlockSpec((tk, tn), lambda i, t, k: (k, i)),    # W^T tile
                state_spec,                                        # membrane potential
                state_spec,                                        # refractory timer
                state_spec,                                        # spike count
            ],
            out_specs=(
                pl.BlockSpec((tt, tn), lambda i, t, k: (t, i)),    # spikes
                state_spec, state_spec, state_spec,
            ),
        ),
        # update v / r / spike_count in place (inputs 2,3,4 -> outputs 1,2,3)
        input_output_aliases={2: 1, 3: 2, 4: 3},
        compiler_params=pltpu.CompilerParams(
            dimension_semantics=("parallel", "arbitrary", "arbitrary"),
            vmem_limit_bytes=_VMEM_LIMIT,
        ),
    )(x, eff_w, v, r, sc)

    return (
        spikes[:n_steps, :out_size],
        v_new[0, :out_size],
        r_new[0, :out_size],
        sc_new[0, :out_size],
    )


# ------------------------------ pure-JAX reference ---------------------------
def _reference_forward_sequence(x_seq, w, m, v, r, sc):
    eff_w = w * m
    spikes_all = []
    for t in range(x_seq.shape[0]):
        current = x_seq[t] @ eff_w.T
        v = v * _DECAY + current
        v = jnp.where(r > 0.0, RESET_POTENTIAL, v)
        r = jnp.maximum(r - TIME_STEP, 0.0)
        spk = (v > SPIKE_THRESHOLD).astype(jnp.float32)
        v = jnp.where(spk > 0.0, RESET_POTENTIAL, v)
        r = jnp.where(spk > 0.0, REFRACTORY_PERIOD, r)
        sc = sc + spk
        spikes_all.append(spk)
    return jnp.stack(spikes_all), v, r, sc


# ----------------------------------- main ------------------------------------
if __name__ == "__main__":
    INPUT_SIZE = 32
    OUTPUT_SIZE = 32
    N_STEPS = 8

    key = jax.random.PRNGKey(0)
    k_w, k_mask, k_x, k_v, k_r = jax.random.split(key, 5)

    # deterministic parameter init mirroring the module's __init__
    weight = jax.random.normal(k_w, (OUTPUT_SIZE, INPUT_SIZE), jnp.float32) * 0.1
    connectivity_mask = (
        jax.random.uniform(k_mask, (OUTPUT_SIZE, INPUT_SIZE)) < SPARSE_CONNECTIVITY
    ).astype(jnp.float32)

    # binary input spike train; non-trivial neuron state so both branches exercise
    input_spike_train = (
        jax.random.uniform(k_x, (N_STEPS, INPUT_SIZE)) < 0.5
    ).astype(jnp.float32)
    membrane_potential = jax.random.uniform(k_v, (OUTPUT_SIZE,)) * 1.5
    refractory_timer = (
        jax.random.uniform(k_r, (OUTPUT_SIZE,)) < 0.25
    ).astype(jnp.float32) * REFRACTORY_PERIOD
    spike_count = jnp.zeros((OUTPUT_SIZE,), jnp.float32)

    # weight preparation hoisted out of the per-call path — done ONCE per layer
    eff_w = prepare_spiking_weights(weight, connectivity_mask, dtype=jnp.float32)

    outs = spiking_layer_forward(
        input_spike_train, eff_w, membrane_potential, refractory_timer, spike_count
    )
    outs = jax.block_until_ready(outs)

    refs = _reference_forward_sequence(
        input_spike_train, weight, connectivity_mask,
        membrane_potential, refractory_timer, spike_count,
    )

    for got, want in zip(outs, refs):
        assert got.shape == want.shape, (got.shape, want.shape)
        assert jnp.allclose(got, want, atol=1e-5), (got, want)

    print("KERNEL_OK")
</pallas_src>

<mosaic_0001>
module attributes {stable_mosaic.version = 11 : i64} {
  func.func @_spiking_layer_kernel(%arg0: i32, %arg1: i32, %arg2: i32, %arg3: memref<8x32xf32, #tpu.memory_space<vmem>>, %arg4: memref<32x128xf32, #tpu.memory_space<vmem>>, %arg5: memref<1x128xf32, #tpu.memory_space<vmem>>, %arg6: memref<1x128xf32, #tpu.memory_space<vmem>>, %arg7: memref<1x128xf32, #tpu.memory_space<vmem>>, %arg8: memref<8x128xf32, #tpu.memory_space<vmem>>, %arg9: memref<1x128xf32, #tpu.memory_space<vmem>>, %arg10: memref<1x128xf32, #tpu.memory_space<vmem>>, %arg11: memref<1x128xf32, #tpu.memory_space<vmem>>) attributes {dimension_semantics = [#tpu.dimension_semantics<parallel>, #tpu.dimension_semantics<arbitrary>, #tpu.dimension_semantics<arbitrary>], iteration_bounds = array<i64: 1, 1, 1>, scalar_prefetch = 0 : i64, scratch_operands = 0 : i64, tpu.core_type = #tpu.core_type<tc>, window_params = [{transform_indices = @transform_0, window_bounds = array<i64: 8, 32>}, {transform_indices = @transform_1, window_bounds = array<i64: 32, 128>}, {transform_indices = @transform_2, window_bounds = array<i64: 1, 128>}, {transform_indices = @transform_3, window_bounds = array<i64: 1, 128>}, {transform_indices = @transform_4, window_bounds = array<i64: 1, 128>}, {transform_indices = @transform_5, window_bounds = array<i64: 8, 128>}, {transform_indices = @transform_6, window_bounds = array<i64: 1, 128>}, {transform_indices = @transform_7, window_bounds = array<i64: 1, 128>}, {transform_indices = @transform_8, window_bounds = array<i64: 1, 128>}]} {
    %c0_i32 = arith.constant 0 : i32
    %0 = arith.cmpi eq, %arg1, %c0_i32 : i32
    %c0_i32_0 = arith.constant 0 : i32
    %1 = arith.cmpi eq, %arg2, %c0_i32_0 : i32
    %2 = arith.andi %0, %1 : i1
    %3 = arith.extui %2 : i1 to i32
    %c0_i32_1 = arith.constant 0 : i32
    %4 = arith.cmpi ne, %3, %c0_i32_1 : i32
    scf.if %4 {
      %c0_13 = arith.constant 0 : index
      %c0_14 = arith.constant 0 : index
      %17 = vector.load %arg5[%c0_13, %c0_14] : memref<1x128xf32, #tpu.memory_space<vmem>>, vector<1x128xf32>
      %c0_15 = arith.constant 0 : index
      %c0_16 = arith.constant 0 : index
      %18 = vector.load %arg9[%c0_15, %c0_16] : memref<1x128xf32, #tpu.memory_space<vmem>>, vector<1x128xf32>
      tpu.vector_store %arg9[%c0_15, %c0_16], %17 {strides = array<i32>} : memref<1x128xf32, #tpu.memory_space<vmem>>, vector<1x128xf32>,
      %c0_17 = arith.constant 0 : index
      %c0_18 = arith.constant 0 : index
      %19 = vector.load %arg6[%c0_17, %c0_18] : memref<1x128xf32, #tpu.memory_space<vmem>>, vector<1x128xf32>
      %c0_19 = arith.constant 0 : index
      %c0_20 = arith.constant 0 : index
      %20 = vector.load %arg10[%c0_19, %c0_20] : memref<1x128xf32, #tpu.memory_space<vmem>>, vector<1x128xf32>
      tpu.vector_store %arg10[%c0_19, %c0_20], %19 {strides = array<i32>} : memref<1x128xf32, #tpu.memory_space<vmem>>, vector<1x128xf32>,
      %c0_21 = arith.constant 0 : index
      %c0_22 = arith.constant 0 : index
      %21 = vector.load %arg7[%c0_21, %c0_22] : memref<1x128xf32, #tpu.memory_space<vmem>>, vector<1x128xf32>
      %c0_23 = arith.constant 0 : index
      %c0_24 = arith.constant 0 : index
      %22 = vector.load %arg11[%c0_23, %c0_24] : memref<1x128xf32, #tpu.memory_space<vmem>>, vector<1x128xf32>
      tpu.vector_store %arg11[%c0_23, %c0_24], %21 {strides = array<i32>} : memref<1x128xf32, #tpu.memory_space<vmem>>, vector<1x128xf32>,
    } else {
    }
    %c0_i32_2 = arith.constant 0 : i32
    %5 = arith.cmpi eq, %arg2, %c0_i32_2 : i32
    %6 = arith.extui %5 : i1 to i32
    %c0_i32_3 = arith.constant 0 : i32
    %7 = arith.cmpi ne, %6, %c0_i32_3 : i32
    scf.if %7 {
      %cst_13 = arith.constant 0.000000e+00 : f32
      %17 = vector.broadcast %cst_13 : f32 to vector<8x128xf32>
      %c0_14 = arith.constant 0 : index
      %c0_15 = arith.constant 0 : index
      %18 = vector.load %arg8[%c0_14, %c0_15] : memref<8x128xf32, #tpu.memory_space<vmem>>, vector<8x128xf32>
      tpu.vector_store %arg8[%c0_14, %c0_15], %17 {strides = array<i32>} : memref<8x128xf32, #tpu.memory_space<vmem>>, vector<8x128xf32>,
    } else {
    }
    %c0 = arith.constant 0 : index
    %c0_4 = arith.constant 0 : index
    %8 = vector.load %arg8[%c0, %c0_4] : memref<8x128xf32, #tpu.memory_space<vmem>>, vector<8x128xf32>
    %c0_5 = arith.constant 0 : index
    %c0_6 = arith.constant 0 : index
    %9 = vector.load %arg3[%c0_5, %c0_6] : memref<8x32xf32, #tpu.memory_space<vmem>>, vector<8x32xf32>
    %c0_7 = arith.constant 0 : index
    %c0_8 = arith.constant 0 : index
    %10 = vector.load %arg4[%c0_7, %c0_8] : memref<32x128xf32, #tpu.memory_space<vmem>>, vector<32x128xf32>
    %cst = arith.constant dense<0.000000e+00> : vector<8x128xf32>
    %11 = tpu.matmul %9, %10, %cst {dimension_numbers = #tpu.dot_dimension_numbers<[1], [0], [0], [1], [0, 0, 1, 1], [], []>} : vector<8x32xf32>, vector<32x128xf32>, vector<8x128xf32> -> vector<8x128xf32>
    %12 = arith.addf %8, %11 : vector<8x128xf32>
    %c0_9 = arith.constant 0 : index
    %c0_10 = arith.constant 0 : index
    %13 = vector.load %arg8[%c0_9, %c0_10] : memref<8x128xf32, #tpu.memory_space<vmem>>, vector<8x128xf32>
    tpu.vector_store %arg8[%c0_9, %c0_10], %12 {strides = array<i32>} : memref<8x128xf32, #tpu.memory_space<vmem>>, vector<8x128xf32>,
    %c0_i32_11 = arith.constant 0 : i32
    %14 = arith.cmpi eq, %arg2, %c0_i32_11 : i32
    %15 = arith.extui %14 : i1 to i32
    %c0_i32_12 = arith.constant 0 : i32
    %16 = arith.cmpi ne, %15, %c0_i32_12 : i32
    scf.if %16 {
      %c8_i32 = arith.constant 8 : i32
      %17 = arith.muli %arg1, %c8_i32 : i32
      %c8_i32_13 = arith.constant 8 : i32
      %18 = arith.subi %c8_i32_13, %17 : i32
      %c8_i32_14 = arith.constant 8 : i32
      %19 = arith.minsi %c8_i32_14, %18 : i32
      %c0_i32_15 = arith.constant 0 : i32
      %c0_i32_16 = arith.constant 0 : i32
      %20 = arith.subi %19, %c0_i32_16 : i32
      %21 = arith.addi %c0_i32_16, %20 : i32
      %c1_i32 = arith.constant 1 : i32
      scf.for %arg12 = %c0_i32_16 to %21 step %c1_i32  : i32 {
        %22 = arith.index_cast %arg12 : i32 to index
        %c0_17 = arith.constant 0 : index
        %23 = vector.load %arg8[%22, %c0_17] : memref<8x128xf32, #tpu.memory_space<vmem>>, vector<1x128xf32>
        %c0_18 = arith.constant 0 : index
        %c0_19 = arith.constant 0 : index
        %24 = vector.load %arg9[%c0_18, %c0_19] : memref<1x128xf32, #tpu.memory_space<vmem>>, vector<1x128xf32>
        %cst_20 = arith.constant 0.951229453 : f32
        %25 = vector.broadcast %cst_20 : f32 to vector<1x128xf32>
        %26 = arith.mulf %24, %25 : vector<1x128xf32>
        %27 = arith.addf %26, %23 : vector<1x128xf32>
        %c0_21 = arith.constant 0 : index
        %c0_22 = arith.constant 0 : index
        %28 = vector.load %arg10[%c0_21, %c0_22] : memref<1x128xf32, #tpu.memory_space<vmem>>, vector<1x128xf32>
        %cst_23 = arith.constant 0.000000e+00 : f32
        %29 = vector.broadcast %cst_23 : f32 to vector<1x128xf32>
        %30 = arith.cmpf ogt, %28, %29 : vector<1x128xf32>
        %cst_24 = arith.constant 0.000000e+00 : f32
        %31 = vector.broadcast %cst_24 : f32 to vector<1x128xf32>
        %32 = arith.select %30, %31, %27 : vector<1x128xi1>, vector<1x128xf32>
        %cst_25 = arith.constant 1.000000e+00 : f32
        %33 = vector.broadcast %cst_25 : f32 to vector<1x128xf32>
        %34 = arith.subf %28, %33 : vector<1x128xf32>
        %cst_26 = arith.constant 0.000000e+00 : f32
        %35 = vector.broadcast %cst_26 : f32 to vector<1x128xf32>
        %36 = arith.maximumf %34, %35 : vector<1x128xf32>
        %cst_27 = arith.constant 1.000000e+00 : f32
        %37 = vector.broadcast %cst_27 : f32 to vector<1x128xf32>
        %38 = arith.cmpf ogt, %32, %37 : vector<1x128xf32>
        %39 = arith.extui %38 : vector<1x128xi1> to vector<1x128xi32>
        %40 = arith.sitofp %39 : vector<1x128xi32> to vector<1x128xf32>
        %cst_28 = arith.constant 0.000000e+00 : f32
        %41 = vector.broadcast %cst_28 : f32 to vector<1x128xf32>
        %42 = arith.cmpf ogt, %40, %41 : vector<1x128xf32>
        %cst_29 = arith.constant 0.000000e+00 : f32
        %43 = vector.broadcast %cst_29 : f32 to vector<1x128xf32>
        %44 = arith.select %42, %43, %32 : vector<1x128xi1>, vector<1x128xf32>
        %c0_30 = arith.constant 0 : index
        %c0_31 = arith.constant 0 : index
        %45 = vector.load %arg9[%c0_30, %c0_31] : memref<1x128xf32, #tpu.memory_space<vmem>>, vector<1x128xf32>
        tpu.vector_store %arg9[%c0_30, %c0_31], %44 {strides = array<i32>} : memref<1x128xf32, #tpu.memory_space<vmem>>, vector<1x128xf32>,
        %cst_32 = arith.constant 0.000000e+00 : f32
        %46 = vector.broadcast %cst_32 : f32 to vector<1x128xf32>
        %47 = arith.cmpf ogt, %40, %46 : vector<1x128xf32>
        %cst_33 = arith.constant 2.000000e+00 : f32
        %48 = vector.broadcast %cst_33 : f32 to vector<1x128xf32>
        %49 = arith.select %47, %48, %36 : vector<1x128xi1>, vector<1x128xf32>
        %c0_34 = arith.constant 0 : index
        %c0_35 = arith.constant 0 : index
        %50 = vector.load %arg10[%c0_34, %c0_35] : memref<1x128xf32, #tpu.memory_space<vmem>>, vector<1x128xf32>
        tpu.vector_store %arg10[%c0_34, %c0_35], %49 {strides = array<i32>} : memref<1x128xf32, #tpu.memory_space<vmem>>, vector<1x128xf32>,
        %c0_36 = arith.constant 0 : index
        %c0_37 = arith.constant 0 : index
        %51 = vector.load %arg11[%c0_36, %c0_37] : memref<1x128xf32, #tpu.memory_space<vmem>>, vector<1x128xf32>
        %52 = arith.addf %51, %40 : vector<1x128xf32>
        %c0_38 = arith.constant 0 : index
        %c0_39 = arith.constant 0 : index
        %53 = vector.load %arg11[%c0_38, %c0_39] : memref<1x128xf32, #tpu.memory_space<vmem>>, vector<1x128xf32>
        tpu.vector_store %arg11[%c0_38, %c0_39], %52 {strides = array<i32>} : memref<1x128xf32, #tpu.memory_space<vmem>>, vector<1x128xf32>,
        %54 = arith.index_cast %arg12 : i32 to index
        %c0_40 = arith.constant 0 : index
        %55 = vector.load %arg8[%54, %c0_40] : memref<8x128xf32, #tpu.memory_space<vmem>>, vector<1x128xf32>
        tpu.vector_store %arg8[%54, %c0_40], %40 {strides = array<i32>} : memref<8x128xf32, #tpu.memory_space<vmem>>, vector<1x128xf32>,
      }
    } else {
    }
    return
  }
  func.func @transform_0(%arg0: i32, %arg1: i32, %arg2: i32) -> (i32, i32) {
    %c0_i32 = arith.constant 0 : i32
    return %arg1, %arg2 : i32, i32
  }
  func.func @transform_1(%arg0: i32, %arg1: i32, %arg2: i32) -> (i32, i32) {
    %c0_i32 = arith.constant 0 : i32
    return %arg2, %arg0 : i32, i32
  }
  func.func @transform_2(%arg0: i32, %arg1: i32, %arg2: i32) -> (i32, i32) {
    %c0_i32 = arith.constant 0 : i32
    %c0_i32_0 = arith.constant 0 : i32
    return %c0_i32, %arg0 : i32, i32
  }
  func.func @transform_3(%arg0: i32, %arg1: i32, %arg2: i32) -> (i32, i32) {
    %c0_i32 = arith.constant 0 : i32
    %c0_i32_0 = arith.constant 0 : i32
    return %c0_i32, %arg0 : i32, i32
  }
  func.func @transform_4(%arg0: i32, %arg1: i32, %arg2: i32) -> (i32, i32) {
    %c0_i32 = arith.constant 0 : i32
    %c0_i32_0 = arith.constant 0 : i32
    return %c0_i32, %arg0 : i32, i32
  }
  func.func @transform_5(%arg0: i32, %arg1: i32, %arg2: i32) -> (i32, i32) {
    %c0_i32 = arith.constant 0 : i32
    return %arg1, %arg0 : i32, i32
  }
  func.func @transform_6(%arg0: i32, %arg1: i32, %arg2: i32) -> (i32, i32) {
    %c0_i32 = arith.constant 0 : i32
    %c0_i32_0 = arith.constant 0 : i32
    return %c0_i32, %arg0 : i32, i32
  }
  func.func @transform_7(%arg0: i32, %arg1: i32, %arg2: i32) -> (i32, i32) {
    %c0_i32 = arith.constant 0 : i32
    %c0_i32_0 = arith.constant 0 : i32
    return %c0_i32, %arg0 : i32, i32
  }
  func.func @transform_8(%arg0: i32, %arg1: i32, %arg2: i32) -> (i32, i32) {
    %c0_i32 = arith.constant 0 : i32
    %c0_i32_0 = arith.constant 0 : i32
    return %c0_i32, %arg0 : i32, i32
  }
}

</mosaic_0001>

<llo_original>
// kernel: spiking_layer_forward.1
$region0: #{spiking_layer_forward.1}
  #allocation0 [shape = 'u32[]', space=smem, size = 0x4, offset = 0x4, fixed_abs, tag = 'smem constant byte address 0x4 - core index']
  #allocation1 [shape = 'u32[144,128]{1,0:T(1,128)}', space=vmem, size = 0x12000, scoped, tag = 'internal scratch']
  %s0 = inlined_call_operand.vmem [shape: f32[8,32], index: 0, kind: input, shape index: {}]
  %s1 = inlined_call_operand.hbm [shape: f32[32,128], index: 1, kind: input, shape index: {}]
  %s2 = inlined_call_operand.vmem [shape: f32[1,128], index: 2, kind: input, shape index: {}, may-alias: {2,6}]
  %s3 = inlined_call_operand.vmem [shape: f32[1,128], index: 3, kind: input, shape index: {}, may-alias: {3,7}]
  %s4 = inlined_call_operand.vmem [shape: f32[1,128], index: 4, kind: input, shape index: {}, may-alias: {4,8}]
  %s5 = inlined_call_operand.hbm [shape: f32[8,128], index: 5, kind: output, shape index: {0}]
  %s6 = inlined_call_operand.vmem [shape: f32[1,128], index: 6, kind: output, shape index: {1}, may-alias: {2,6}]
  %s7 = inlined_call_operand.vmem [shape: f32[1,128], index: 7, kind: output, shape index: {2}, may-alias: {3,7}]
  %s8 = inlined_call_operand.vmem [shape: f32[1,128], index: 8, kind: output, shape index: {3}, may-alias: {4,8}]
  %9 = xla_tuple %s5, %s6, %s7, %s8
  %s10 = sld [smem:[#allocation0]]
  $region77: #{spiking_layer_forward.1} parent=0
    _
  %s12 = ssub.s32 1, %s10
  %s13 = scalar_select 0, %s12, %s10
  $region1: #{spiking_layer_forward.1} parent=0
    #allocation2 [shape = 'u8[16384]{0}', space=vmem, size = 0x4000, scoped, tag = 'input window, operand 1, single buffered']
    #allocation3 [shape = 's32[1]{0}', space=sflag, size = 0x4, scoped, tag = 'scoped memory for spiking_layer_forward.1']
    #allocation4 [shape = 's32[1]{0}', space=sflag, size = 0x4, scoped, tag = 'scoped memory for spiking_layer_forward.1']
    #allocation5 [shape = 'u8[4096]{0}', space=vmem, size = 0x1000, scoped, tag = 'output window, operand 0, single buffered']
    %14 = vsyncpa [#allocation3], 0
    %15 = vsyncpa [#allocation4], 0
    // Predicated region
    $region2: #{spiking_layer_forward.1} parent=1 // pred_check
      _
    $region3: #{spiking_layer_forward.1} parent=1 // pred_check_branch
      %17 = sbr.rel (0) target = $region5
    $region4: #{spiking_layer_forward.1} parent=1 // pred_region
      _
    $region5: #{spiking_layer_forward.1} parent=1 // pred_fallthru
      _
    // Predicated region
    $region6: #{spiking_layer_forward.1} parent=1 // pred_check
      _
    $region7: #{spiking_layer_forward.1} parent=1 // pred_check_branch
      %19 = sbr.rel (0) target = $region9
    $region8: #{spiking_layer_forward.1} parent=1 // pred_region
      %s21 = ssub.s32 512, 512
      %22 = vsyncadd [#allocation3], %s21
      %s23 = sshll.u32 [#allocation2], 4
      %s24 = int_to_ptr.vmem [resolvable:$true] %s23
      %29 = dma.hbm_to_vmem [thread:$0]  %s1, 512, %s24, [#allocation3], 128, 128, 8
    $region9: #{spiking_layer_forward.1} parent=1 // pred_fallthru
      _
    // Predicated region
    $region10: #{spiking_layer_forward.1} parent=1 // pred_check
      _
    $region11: #{spiking_layer_forward.1} parent=1 // pred_check_branch
      %31 = sbr.rel (0) target = $region13
    $region12: #{spiking_layer_forward.1} parent=1 // pred_region
      _
    $region13: #{spiking_layer_forward.1} parent=1 // pred_fallthru
      _
    // Predicated region
    $region14: #{spiking_layer_forward.1} parent=1 // pred_check
      _
    $region15: #{spiking_layer_forward.1} parent=1 // pred_check_branch
      %33 = sbr.rel (0) target = $region17
    $region16: #{spiking_layer_forward.1} parent=1 // pred_region
      _
    $region17: #{spiking_layer_forward.1} parent=1 // pred_fallthru
      _
    // Predicated region
    $region18: #{spiking_layer_forward.1} parent=1 // pred_check
      _
    $region19: #{spiking_layer_forward.1} parent=1 // pred_check_branch
      %35 = sbr.rel (0) target = $region21
    $region20: #{spiking_layer_forward.1} parent=1 // pred_region
      _
    $region21: #{spiking_layer_forward.1} parent=1 // pred_fallthru
      _
    // Predicated region
    $region22: #{spiking_layer_forward.1} parent=1 // pred_check
      _
    $region23: #{spiking_layer_forward.1} parent=1 // pred_check_branch
      %37 = sbr.rel (0) target = $region25
    $region24: #{spiking_layer_forward.1} parent=1 // pred_region
      %38 = dma.done [#allocation3], 512
    $region25: #{spiking_layer_forward.1} parent=1 // pred_fallthru
      _
    %p39 = scmp.eq.s32.totalorder 0, 0
    %p40 = scmp.eq.s32.totalorder 0, 0
    %p41 = pnand %p39, %p40
    %p42 = pneg %p41
    // Predicated region
    $region26: #{spiking_layer_forward.1} parent=1 // pred_check
      _
    $region27: #{spiking_layer_forward.1} parent=1 // pred_check_branch
      %44 = sbr.rel (%p41) target = $region29
    $region28: #{spiking_layer_forward.1} parent=1 // pred_region
      %v45 = vld [vmem:[%s2] sm:$0x1]
      %46 = vst [vmem:[%s6] sm:$0x1] %v45
      %v47 = vld [vmem:[%s3] sm:$0x1]
      %48 = vst [vmem:[%s7] sm:$0x1] %v47
      %v49 = vld [vmem:[%s4] sm:$0x1]
      %50 = vst [vmem:[%s8] sm:$0x1] %v49
    $region29: #{spiking_layer_forward.1} parent=1 // pred_fallthru
      _
    // Predicated region
    $region30: #{spiking_layer_forward.1} parent=1 // pred_check
      %p51 = pneg %p40
    $region31: #{spiking_layer_forward.1} parent=1 // pred_check_branch
      %53 = sbr.rel (%p51) target = $region33
    $region32: #{spiking_layer_forward.1} parent=1 // pred_region
      %54 = vst [vmem:[#allocation5] sm:$0xff] 0.0
    $region33: #{spiking_layer_forward.1} parent=1 // pred_fallthru
      _
    %v55 = vld [vmem:[#allocation5] sm:$0xff]
    %v56 = vld [vmem:[%s0] sm:$0xff]
    %v57 = vld [vmem:[#allocation2] sm:$0xff]
    %v58 = vld [vmem:[#allocation2 + $0x8] sm:$0xff]
    %v59 = vld [vmem:[#allocation2 + $0x10] sm:$0xff]
    %v60 = vld [vmem:[#allocation2 + $0x18] sm:$0xff]
    %vm61 = vcmask 261120
    %v63 = vsel %vm61, %v56, 0
    %65 = vmatprep.subr.mxu0 0.0
    %66 = vmatpush1.msra.mxu0 %v57
    %67 = vmatprep.subr.mxu0 0.0
    %68 = vmatpush1.msra.mxu0 %v58
    %69 = vmatprep.subr.mxu0 0.0
    %70 = vmatpush1.msra.mxu0 %v59
    %71 = vmatprep.subr.mxu0 0.0
    %72 = vmatpush1.msra.mxu0 %v60
    %73 = vmatprep.subr.mxu0 0.0
    %74 = vmatpush1.msra.mxu0 0.0
    %75 = vmatprep.subr.mxu0 0.0
    %76 = vmatpush1.msra.mxu0 0.0
    %77 = vmatprep.subr.mxu0 0.0
    %78 = vmatpush1.msra.mxu0 0.0
    %79 = vmatprep.subr.mxu0 0.0
    %80 = vmatpush1.msra.mxu0 0.0
    %81 = vmatprep.subr.mxu0 0.0
    %82 = vmatpush1.msra.mxu0 0.0
    %83 = vmatprep.subr.mxu0 0.0
    %84 = vmatpush1.msra.mxu0 0.0
    %85 = vmatprep.subr.mxu0 0.0
    %86 = vmatpush1.msra.mxu0 0.0
    %87 = vmatprep.subr.mxu0 0.0
    %88 = vmatpush1.msra.mxu0 0.0
    %89 = vmatprep.subr.mxu0 0.0
    %90 = vmatpush1.msra.mxu0 0.0
    %91 = vmatprep.subr.mxu0 0.0
    %92 = vmatpush1.msra.mxu0 0.0
    %93 = vmatprep.subr.mxu0 0.0
    %94 = vmatpush1.msra.mxu0 0.0
    %95 = vmatprep.subr.mxu0 0.0
    %96 = vmatpush1.msra.mxu0 0.0
    %97 = vmatprep.subr.mxu0 0.0
    %98 = vmatpush1.msra.mxu0 0.0
    %99 = vmatprep.subr.mxu0 0.0
    %100 = vmatpush1.msra.mxu0 0.0
    %101 = vmatprep.subr.mxu0 0.0
    %102 = vmatpush1.msra.mxu0 0.0
    %103 = vmatprep.subr.mxu0 0.0
    %104 = vmatpush1.msra.mxu0 0.0
    %105 = vmatprep.subr.mxu0 0.0
    %106 = vmatpush1.msra.mxu0 0.0
    %107 = vmatprep.subr.mxu0 0.0
    %108 = vmatpush1.msra.mxu0 0.0
    %109 = vmatprep.subr.mxu0 0.0
    %110 = vmatpush1.msra.mxu0 0.0
    %111 = vmatprep.subr.mxu0 0.0
    %112 = vmatpush1.msra.mxu0 0.0
    %113 = vmatprep.subr.mxu0 0.0
    %114 = vmatpush1.msra.mxu0 0.0
    %115 = vmatprep.subr.mxu0 0.0
    %116 = vmatpush1.msra.mxu0 0.0
    %117 = vmatprep.subr.mxu0 0.0
    %118 = vmatpush1.msra.mxu0 0.0
    %119 = vmatprep.subr.mxu0 0.0
    %120 = vmatpush1.msra.mxu0 0.0
    %121 = vmatprep.subr.mxu0 0.0
    %122 = vmatpush1.msra.mxu0 0.0
    %123 = vmatprep.subr.mxu0 0.0
    %124 = vmatpush1.msra.mxu0 0.0
    %125 = vmatprep.subr.mxu0 0.0
    %126 = vmatpush1.msra.mxu0 0.0
    %127 = vmatprep.subr.mxu0 0.0
    %128 = vmatpush1.msra.mxu0 0.0
    %129 = vmatprep.mubr.f32.mxu0 0.0
    %130 = vmatmul.mubr.f32.gmra.mrb[0].mxu0 %v63
    %v131 = vpop.f32.mrb[0].mxu0
    %v132 = vadd.f32 0.0, %v131
    %v133 = vpop.f32.mrb[0].mxu0
    %134 = vdwg.mxu0
    %v135 = vadd.f32 %v55, %v132
    %136 = vst [vmem:[#allocation5] sm:$0xff] %v135
    // Predicated region
    $region34: #{spiking_layer_forward.1} parent=1 // pred_check
      %p137 = pneg %p40
    $region35: #{spiking_layer_forward.1} parent=1 // pred_check_branch
      %139 = sbr.rel (%p137) target = $region37
    $region36: #{spiking_layer_forward.1} parent=1 // pred_region
      %s140 = smul.u32 0, 8
      %s141 = ssub.s32 8, %s140
      %p142 = scmp.lt.s32.totalorder %s141, 8
      %s143 = scalar_select %p142, %s141, 8
      // While loop
      $region38: #{spiking_layer_forward.1} parent=36 // loop_pre_header
        _
      $region39: #{spiking_layer_forward.1} parent=36 // loop_header
        %s145 = sphi 0, %s147
        %p146 = scmp.ge.s32.totalorder %s145, %s143
      $region40: #{spiking_layer_forward.1} parent=36 // loop_header_branch
        %149 = sbr.rel (%p146) target = $region44
      $region41: #{spiking_layer_forward.1} parent=36 // loop_body
        %s150 = scalar_lea.vmem [#allocation5], %s145
        %v151 = vld [vmem:[%s150] sm:$0x1]
        %v152 = vld [vmem:[%s6] sm:$0x1]
        %v153 = vmul.f32 %v152, 0.95122945
        %v154 = vadd.f32 %v153, %v151
        %v155 = vld [vmem:[%s7] sm:$0x1]
        %vm156 = vcmp.gt.f32.partialorder %v155, 0.0
        %v157 = vsel %vm156, 0.0, %v154
        %v158 = vsub.f32 %v155, 1.0
        %v159 = vmax.f32 %v158, 0.0
        %vm160 = vcmp.gt.f32.partialorder %v157, 1.0
        %v161 = vsel %vm160, 1, 0
        %v162 = vcvt.s32.f32 %v161
        %vm163 = vcmp.gt.f32.partialorder %v162, 0.0
        %v164 = vsel %vm163, 0.0, %v157
        %165 = vst [vmem:[%s6] sm:$0x1] %v164
        %v166 = vsel %vm163, 2.0, %v159
        %167 = vst [vmem:[%s7] sm:$0x1] %v166
        %v168 = vld [vmem:[%s8] sm:$0x1]
        %v169 = vadd.f32 %v168, %v162
        %170 = vst [vmem:[%s8] sm:$0x1] %v169
        %171 = vst [vmem:[%s150] sm:$0x1] %v162
      $region42: #{spiking_layer_forward.1} parent=36 // loop_footer
        %s147 = sadd.s32 %s145, 1
      $region43: #{spiking_layer_forward.1} parent=36 // loop_footer_branch
        %144 = sbr.rel target = $region39
      $region44: #{spiking_layer_forward.1} parent=36 // loop_exit
        _
    $region37: #{spiking_layer_forward.1} parent=1 // pred_fallthru
      _
    // Predicated region
    $region45: #{spiking_layer_forward.1} parent=1 // pred_check
      _
    $region46: #{spiking_layer_forward.1} parent=1 // pred_check_branch
      %173 = sbr.rel (0) target = $region48
    $region47: #{spiking_layer_forward.1} parent=1 // pred_region
      %s175 = ssub.s32 128, 128
      %176 = vsyncadd [#allocation4], %s175
      %s178 = sshll.u32 [#allocation5], 4
      %s179 = int_to_ptr.vmem [resolvable:$true] %s178
      %181 = dma.vmem_to_hbm [thread:$0]  %s179, 128, %s5, [#allocation4]
    $region48: #{spiking_layer_forward.1} parent=1 // pred_fallthru
      _
    // Predicated region
    $region49: #{spiking_layer_forward.1} parent=1 // pred_check
      _
    $region50: #{spiking_layer_forward.1} parent=1 // pred_check_branch
      %183 = sbr.rel (0) target = $region52
    $region51: #{spiking_layer_forward.1} parent=1 // pred_region
      _
    $region52: #{spiking_layer_forward.1} parent=1 // pred_fallthru
      _
    // Predicated region
    $region53: #{spiking_layer_forward.1} parent=1 // pred_check
      _
    $region54: #{spiking_layer_forward.1} parent=1 // pred_check_branch
      %185 = sbr.rel (0) target = $region56
    $region55: #{spiking_layer_forward.1} parent=1 // pred_region
      _
    $region56: #{spiking_layer_forward.1} parent=1 // pred_fallthru
      _
    // Predicated region
    $region57: #{spiking_layer_forward.1} parent=1 // pred_check
      _
    $region58: #{spiking_layer_forward.1} parent=1 // pred_check_branch
      %187 = sbr.rel (0) target = $region60
    $region59: #{spiking_layer_forward.1} parent=1 // pred_region
      _
    $region60: #{spiking_layer_forward.1} parent=1 // pred_fallthru
      _
    // Predicated region
    $region61: #{spiking_layer_forward.1} parent=1 // pred_check
      _
    $region62: #{spiking_layer_forward.1} parent=1 // pred_check_branch
      %189 = sbr.rel (0) target = $region64
    $region63: #{spiking_layer_forward.1} parent=1 // pred_region
      %190 = dma.done [#allocation4], 128
    $region64: #{spiking_layer_forward.1} parent=1 // pred_fallthru
      _
    // Predicated region
    $region65: #{spiking_layer_forward.1} parent=1 // pred_check
      _
    $region66: #{spiking_layer_forward.1} parent=1 // pred_check_branch
      %192 = sbr.rel (0) target = $region68
    $region67: #{spiking_layer_forward.1} parent=1 // pred_region
      _
    $region68: #{spiking_layer_forward.1} parent=1 // pred_fallthru
      _
    // Predicated region
    $region69: #{spiking_layer_forward.1} parent=1 // pred_check
      _
    $region70: #{spiking_layer_forward.1} parent=1 // pred_check_branch
      %194 = sbr.rel (0) target = $region72
    $region71: #{spiking_layer_forward.1} parent=1 // pred_region
      _
    $region72: #{spiking_layer_forward.1} parent=1 // pred_fallthru
      _
    // Predicated region
    $region73: #{spiking_layer_forward.1} parent=1 // pred_check
      _
    $region74: #{spiking_layer_forward.1} parent=1 // pred_check_branch
      %196 = sbr.rel (0) target = $region76
    $region75: #{spiking_layer_forward.1} parent=1 // pred_region
      _
    $region76: #{spiking_layer_forward.1} parent=1 // pred_fallthru
      _
    %197 = vsyncpa [#allocation3], 1
    %198 = vsyncpa [#allocation4], 1

</llo_original>
